<compile_context>
chip_gen: v6e
topology: v6e:2x2x1
jax: 0.10.0
libtpu: 0.0.40
codegen_flags: <defaults>
</compile_context>

<pallas_src>
import functools

import jax
import jax.numpy as jnp
from jax.experimental import pallas as pl
from jax.experimental.pallas import tpu as pltpu

BN_EPS = 1e-5


# ----------------------------------------------------------------------------
# Pallas kernels
# ----------------------------------------------------------------------------
def _binconv_bn_kernel(apply_sign, p_ref, w_ref, scale_ref, shift_ref, o_ref):
  """Fused: out = [signum]( (P @ W_bin) * bn_scale + bn_shift ).

  P and W_bin arrive as bf16 (+/-1 except the real-valued first-layer input);
  the matmul accumulates in f32 on the MXU, BN + sign run on the VPU.
  """
  acc = jnp.dot(p_ref[...], w_ref[...], preferred_element_type=jnp.float32)
  y = acc * scale_ref[...] + shift_ref[...]          # BatchNorm (eval), f32
  if apply_sign:
    # SignumActivation, 0 -> +1 (BinaryNet convention); exact in bf16.
    y = jnp.where(y >= 0, 1.0, -1.0)
  o_ref[...] = y.astype(o_ref.dtype)


def _softmax_axis0_kernel(x_ref, o_ref):
  x = x_ref[...]
  m = jnp.max(x, axis=0, keepdims=True)
  e = jnp.exp(x - m)
  o_ref[...] = e / jnp.sum(e, axis=0, keepdims=True)


# ----------------------------------------------------------------------------
# Pallas wrappers
# ----------------------------------------------------------------------------
def binconv_bn_matmul(patches, w_bin, bn_scale, bn_shift, apply_sign):
  """patches [M, K], w_bin [K, N] (already binarized, bf16), bn scale/shift [N].

  Single-tile K and N (no reduction grid axis); M split into <=2 parallel
  blocks so v7x's two TensorCores both get work.
  """
  M, K = patches.shape
  N = w_bin.shape[1]
  tm = M if M < 64 else M // 2          # M in {32,128,512} -> tm in {32,64,256}
  assert M % tm == 0 and tm % 8 == 0

  out_dtype = jnp.bfloat16 if apply_sign else jnp.float32
  p = patches.astype(jnp.bfloat16)      # +/-1 exact; only layer-1 image rounds
  sc = bn_scale.reshape(1, N).astype(jnp.float32)
  sh = bn_shift.reshape(1, N).astype(jnp.float32)

  out_bytes = 2 if apply_sign else 4
  cost = pl.CostEstimate(
      flops=2 * M * K * N,
      transcendentals=0,
      bytes_accessed=2 * (M * K + K * N) + out_bytes * M * N + 8 * N)

  return pl.pallas_call(
      functools.partial(_binconv_bn_kernel, apply_sign),
      out_shape=jax.ShapeDtypeStruct((M, N), out_dtype),
      grid=(M // tm,),
      in_specs=[
          pl.BlockSpec((tm, K), lambda i: (i, 0)),
          pl.BlockSpec((K, N), lambda i: (0, 0)),
          pl.BlockSpec((1, N), lambda i: (0, 0)),
          pl.BlockSpec((1, N), lambda i: (0, 0)),
      ],
      out_specs=pl.BlockSpec((tm, N), lambda i: (i, 0)),
      compiler_params=pltpu.CompilerParams(
          dimension_semantics=("parallel",)),
      cost_estimate=cost,
  )(p, w_bin, sc, sh)


def softmax_axis0(x2d):
  """Softmax over axis 0 of a 2-D array (single-block Pallas kernel)."""
  n, l = x2d.shape
  return pl.pallas_call(
      _softmax_axis0_kernel,
      out_shape=jax.ShapeDtypeStruct((n, l), x2d.dtype),
      grid=(1,),
      in_specs=[pl.BlockSpec((n, l), lambda i: (0, 0))],
      out_specs=pl.BlockSpec((n, l), lambda i: (0, 0)),
  )(x2d)


# ----------------------------------------------------------------------------
# JAX glue: weight binarization / im2col / dilation / layer drivers
# ----------------------------------------------------------------------------
def _binarize_weights(w2d):
  """sign-binarize (0 -> +1) and cast to bf16 (+/-1 is exact in bf16)."""
  return jnp.where(w2d >= 0, 1.0, -1.0).astype(jnp.bfloat16)


def _im2col_3x3(x, stride, pad):
  """x: [N,H,W,C] -> patches [N*Ho*Wo, 9*C] ordered (kh, kw, C)."""
  n, h, w, c = x.shape
  xp = jnp.pad(x, ((0, 0), (pad, pad), (pad, pad), (0, 0)))
  hp, wp = h + 2 * pad, w + 2 * pad
  ho = (hp - 3) // stride + 1
  wo = (wp - 3) // stride + 1
  cols = []
  for dh in range(3):
    for dw in range(3):
      cols.append(xp[:, dh:dh + stride * (ho - 1) + 1:stride,
                     dw:dw + stride * (wo - 1) + 1:stride, :])
  patches = jnp.concatenate(cols, axis=-1)          # [N, Ho, Wo, 9*C]
  return patches.reshape(n * ho * wo, 9 * c), (n, ho, wo)


def binarize_conv2d_bn(x, w_pt, bn_scale, bn_shift, stride, apply_sign):
  """BinarizeConv2d(k=3, pad=1) + BatchNorm2d + optional SignumActivation.

  x: [N,H,W,C_in] NHWC, w_pt: PyTorch Conv2d layout [C_out, C_in, 3, 3].
  """
  cout = w_pt.shape[0]
  w = jnp.transpose(w_pt, (2, 3, 1, 0)).reshape(-1, cout)  # [(kh,kw,Cin), Cout]
  w_bin = _binarize_weights(w)
  patches, (n, ho, wo) = _im2col_3x3(x, stride, pad=1)
  out = binconv_bn_matmul(patches, w_bin, bn_scale, bn_shift, apply_sign)
  return out.reshape(n, ho, wo, cout)


def binarize_tconv2d_bn(x, w_pt, bn_scale, bn_shift, stride, apply_sign):
  """BinarizeTransposedConv2d(k=3, pad=1, output_padding=1) + BN + Signum.

  x: [N,H,W,C_in] NHWC, w_pt: PyTorch ConvTranspose2d layout [C_in, C_out, 3, 3].
  Implemented as: dilate input by stride, pad (k-1-p, k-1-p+op), stride-1 conv
  with spatially flipped / channel-swapped kernel.
  """
  n, h, w_sz, c = x.shape
  cout = w_pt.shape[1]
  # dilate
  xd = jnp.zeros((n, (h - 1) * stride + 1, (w_sz - 1) * stride + 1, c), x.dtype)
  xd = xd.at[:, ::stride, ::stride, :].set(x)
  # asymmetric pad: low = k-1-p = 1, high = k-1-p+output_padding = 2
  xd = jnp.pad(xd, ((0, 0), (1, 2), (1, 2), (0, 0)))
  # flip kernel spatially, swap in/out channels -> [(kh,kw,Cin), Cout]
  wf = jnp.transpose(w_pt[:, :, ::-1, ::-1], (2, 3, 0, 1)).reshape(-1, cout)
  w_bin = _binarize_weights(wf)
  patches, (n_, ho, wo) = _im2col_3x3(xd, stride=1, pad=0)
  out = binconv_bn_matmul(patches, w_bin, bn_scale, bn_shift, apply_sign)
  return out.reshape(n_, ho, wo, cout)


# ----------------------------------------------------------------------------
# Model definition / parameters
# ----------------------------------------------------------------------------
RATIO_INFL = 16
FRONT_CFG = [  # (kind, C_in, C_out, stride)
    ("conv", 3, 4 * RATIO_INFL, 2),
    ("conv", 4 * RATIO_INFL, 4 * RATIO_INFL, 1),
    ("conv", 4 * RATIO_INFL, 8 * RATIO_INFL, 2),
    ("conv", 8 * RATIO_INFL, 8 * RATIO_INFL, 1),
    ("conv", 8 * RATIO_INFL, 16 * RATIO_INFL, 1),
    ("tconv", 16 * RATIO_INFL, 16 * RATIO_INFL, 2),
    ("conv", 16 * RATIO_INFL, 8 * RATIO_INFL, 1),
    ("tconv", 8 * RATIO_INFL, 8 * RATIO_INFL, 2),
    ("conv", 8 * RATIO_INFL, 4 * RATIO_INFL, 1),
]


def _make_bn_scale_shift(key, c, conv_bias):
  kg, kb, km, kv = jax.random.split(key, 4)
  gamma = 1.0 + 0.1 * jax.random.normal(kg, (c,), jnp.float32)
  beta = 0.1 * jax.random.normal(kb, (c,), jnp.float32)
  mean = 0.1 * jax.random.normal(km, (c,), jnp.float32)
  var = jax.random.uniform(kv, (c,), jnp.float32, 0.5, 1.5)
  scale = gamma / jnp.sqrt(var + BN_EPS)
  # conv bias is added before BN -> fold into shift
  shift = (conv_bias - mean) * scale + beta
  return scale, shift


def init_params(key, num_classes):
  front = []
  for i, (kind, cin, cout, stride) in enumerate(FRONT_CFG):
    kw_, kb_, kbn = jax.random.split(jax.random.fold_in(key, i), 3)
    if kind == "conv":
      w = 0.1 * jax.random.normal(kw_, (cout, cin, 3, 3), jnp.float32)
    else:  # ConvTranspose2d weight layout
      w = 0.1 * jax.random.normal(kw_, (cin, cout, 3, 3), jnp.float32)
    b = 0.1 * jax.random.normal(kb_, (cout,), jnp.float32)
    sc, sh = _make_bn_scale_shift(kbn, cout, b)
    front.append((kind, stride, w, sc, sh))
  kw_, kb_, kbn = jax.random.split(jax.random.fold_in(key, 1000), 3)
  wt = 0.1 * jax.random.normal(kw_, (num_classes, 4 * RATIO_INFL, 3, 3),
                               jnp.float32)
  bt = 0.1 * jax.random.normal(kb_, (num_classes,), jnp.float32)
  sct, sht = _make_bn_scale_shift(kbn, num_classes, bt)
  return {"front": front, "tail": (wt, sct, sht)}


def bden_forward(x_nchw, params):
  x = jnp.transpose(x_nchw, (0, 2, 3, 1)).astype(jnp.float32)  # NCHW -> NHWC

  # InputScale
  # TODO(synk): InputScale source not provided; assumed identity scaling.
  x = x

  # FrontLayer: (BinarizeConv / BinarizeTransposedConv) + BN + Signum, fused.
  for kind, stride, w, sc, sh in params["front"]:
    if kind == "conv":
      x = binarize_conv2d_bn(x, w, sc, sh, stride, apply_sign=True)
    else:
      x = binarize_tconv2d_bn(x, w, sc, sh, stride, apply_sign=True)

  # TailLayer: BinarizeConv2d + BN (no sign) + Softmax(dim=0)
  wt, sct, sht = params["tail"]
  x = binarize_conv2d_bn(x, wt, sct, sht, 1, apply_sign=False)

  n, h, w_sz, c = x.shape
  x = softmax_axis0(x.reshape(n, h * w_sz * c)).reshape(n, h, w_sz, c)

  return jnp.transpose(x, (0, 3, 1, 2))  # NHWC -> NCHW


if __name__ == "__main__":
  num_classes = 5
  key = jax.random.PRNGKey(0)
  k_x, k_p = jax.random.split(key)

  x = jax.random.normal(k_x, (2, 3, 16, 16), jnp.float32)  # NCHW, like PyTorch
  params = init_params(k_p, num_classes)

  out = bden_forward(x, params)
  out = jax.block_until_ready(out)

  assert out.shape == (2, num_classes, 16, 16), out.shape
  assert bool(jnp.all(jnp.isfinite(out)))
  # softmax over dim=0: sums over the batch axis should be ~1
  assert bool(jnp.allclose(jnp.sum(out, axis=0), 1.0, atol=1e-5))

  print("KERNEL_OK")
</pallas_src>

<mosaic_0001>
module attributes {stable_mosaic.version = 11 : i64} {
  func.func @_binconv_bn_kernel(%arg0: i32, %arg1: memref<64x27xbf16, #tpu.memory_space<vmem>>, %arg2: memref<27x64xbf16, #tpu.memory_space<vmem>>, %arg3: memref<1x64xf32, #tpu.memory_space<vmem>>, %arg4: memref<1x64xf32, #tpu.memory_space<vmem>>, %arg5: memref<64x64xbf16, #tpu.memory_space<vmem>>) attributes {dimension_semantics = [#tpu.dimension_semantics<parallel>], iteration_bounds = array<i64: 2>, scalar_prefetch = 0 : i64, scratch_operands = 0 : i64, tpu.core_type = #tpu.core_type<tc>, window_params = [{transform_indices = @transform_0, window_bounds = array<i64: 64, 27>}, {pipeline_mode = #tpu.pipeline_mode<synchronous>, transform_indices = @transform_1, window_bounds = array<i64: 27, 64>}, {pipeline_mode = #tpu.pipeline_mode<synchronous>, transform_indices = @transform_2, window_bounds = array<i64: 1, 64>}, {pipeline_mode = #tpu.pipeline_mode<synchronous>, transform_indices = @transform_3, window_bounds = array<i64: 1, 64>}, {transform_indices = @transform_4, window_bounds = array<i64: 64, 64>}]} {
    %c0 = arith.constant 0 : index
    %c0_0 = arith.constant 0 : index
    %0 = vector.load %arg1[%c0, %c0_0] : memref<64x27xbf16, #tpu.memory_space<vmem>>, vector<64x27xbf16>
    %c0_1 = arith.constant 0 : index
    %c0_2 = arith.constant 0 : index
    %1 = vector.load %arg2[%c0_1, %c0_2] : memref<27x64xbf16, #tpu.memory_space<vmem>>, vector<27x64xbf16>
    %cst = arith.constant dense<0.000000e+00> : vector<64x64xf32>
    %2 = tpu.matmul %0, %1, %cst {dimension_numbers = #tpu.dot_dimension_numbers<[1], [0], [0], [1], [0, 0, 1, 1], [], []>} : vector<64x27xbf16>, vector<27x64xbf16>, vector<64x64xf32> -> vector<64x64xf32>
    %c0_3 = arith.constant 0 : index
    %c0_4 = arith.constant 0 : index
    %3 = vector.load %arg3[%c0_3, %c0_4] : memref<1x64xf32, #tpu.memory_space<vmem>>, vector<1x64xf32>
    %4 = vector.broadcast %3 : vector<1x64xf32> to vector<64x64xf32>
    %5 = arith.mulf %2, %4 : vector<64x64xf32>
    %c0_5 = arith.constant 0 : index
    %c0_6 = arith.constant 0 : index
    %6 = vector.load %arg4[%c0_5, %c0_6] : memref<1x64xf32, #tpu.memory_space<vmem>>, vector<1x64xf32>
    %7 = vector.broadcast %6 : vector<1x64xf32> to vector<64x64xf32>
    %8 = arith.addf %5, %7 : vector<64x64xf32>
    %cst_7 = arith.constant 0.000000e+00 : f32
    %9 = vector.broadcast %cst_7 : f32 to vector<64x64xf32>
    %10 = arith.cmpf oge, %8, %9 : vector<64x64xf32>
    %cst_8 = arith.constant 1.000000e+00 : f32
    %cst_9 = arith.constant -1.000000e+00 : f32
    %11 = vector.broadcast %cst_8 : f32 to vector<64x64xf32>
    %12 = vector.broadcast %cst_9 : f32 to vector<64x64xf32>
    %13 = arith.select %10, %11, %12 : vector<64x64xi1>, vector<64x64xf32>
    %14 = arith.truncf %13 : vector<64x64xf32> to vector<64x64xbf16>
    %c0_10 = arith.constant 0 : index
    %c0_11 = arith.constant 0 : index
    %15 = vector.load %arg5[%c0_10, %c0_11] : memref<64x64xbf16, #tpu.memory_space<vmem>>, vector<64x64xbf16>
    tpu.vector_store %arg5[%c0_10, %c0_11], %14 {strides = array<i32>} : memref<64x64xbf16, #tpu.memory_space<vmem>>, vector<64x64xbf16>,
    return
  }
  func.func @transform_0(%arg0: i32) -> (i32, i32) {
    %c0_i32 = arith.constant 0 : i32
    %c0_i32_0 = arith.constant 0 : i32
    return %arg0, %c0_i32 : i32, i32
  }
  func.func @transform_1(%arg0: i32) -> (i32, i32) {
    %c0_i32 = arith.constant 0 : i32
    %c0_i32_0 = arith.constant 0 : i32
    %c0_i32_1 = arith.constant 0 : i32
    return %c0_i32, %c0_i32_0 : i32, i32
  }
  func.func @transform_2(%arg0: i32) -> (i32, i32) {
    %c0_i32 = arith.constant 0 : i32
    %c0_i32_0 = arith.constant 0 : i32
    %c0_i32_1 = arith.constant 0 : i32
    return %c0_i32, %c0_i32_0 : i32, i32
  }
  func.func @transform_3(%arg0: i32) -> (i32, i32) {
    %c0_i32 = arith.constant 0 : i32
    %c0_i32_0 = arith.constant 0 : i32
    %c0_i32_1 = arith.constant 0 : i32
    return %c0_i32, %c0_i32_0 : i32, i32
  }
  func.func @transform_4(%arg0: i32) -> (i32, i32) {
    %c0_i32 = arith.constant 0 : i32
    %c0_i32_0 = arith.constant 0 : i32
    return %arg0, %c0_i32 : i32, i32
  }
}

</mosaic_0001>

<llo_original>
// kernel: tpu_custom_call.1
$region0: #{tpu_custom_call.1}
  #allocation0 [shape = 'u32[]', space=smem, size = 0x4, offset = 0x4, fixed_abs, tag = 'smem constant byte address 0x4 - core index']
  #allocation1 [shape = 'u32[144,128]{1,0:T(1,128)}', space=vmem, size = 0x12000, scoped, tag = 'internal scratch']
  %s0 = inlined_call_operand.vmem [shape: bf16[128,27], index: 0, kind: input, shape index: {}]
  %s1 = inlined_call_operand.vmem [shape: bf16[27,64], index: 1, kind: input, shape index: {}]
  %s2 = inlined_call_operand.vmem [shape: f32[1,64], index: 2, kind: input, shape index: {}]
  %s3 = inlined_call_operand.vmem [shape: f32[1,64], index: 3, kind: input, shape index: {}]
  %s4 = inlined_call_operand.vmem [shape: bf16[128,64], index: 4, kind: output, shape index: {}]
  %s5 = sld [smem:[#allocation0]]
  $region49: #{tpu_custom_call.1} parent=0
    _
  %s7 = ssub.s32 1, %s5
  %s8 = scalar_select 0, %s7, %s5
  loop: start=0, step=1, limit=4
  $region2: #{tpu_custom_call.1} parent=0 // loop_pre_header
    _
  $region3: #{tpu_custom_call.1} parent=0 // loop_header
    %s10 = sphi 0, %s14
    %p11 = scmp.ge.s32.totalorder %s10, 4
    %s20 = sphi 0, %s22
    %s23 = sphi 0, %s20
    %s24 = sphi 0, %s23
    %s40 = sphi 0, %s24
    %s44 = sphi 0, %s44
    %s46 = sphi 0, %s44
    %s47 = sphi 0, %s46
    %s61 = sphi 0, %s47
    %s65 = sphi 0, %s65
    %s67 = sphi 0, %s65
    %s68 = sphi 0, %s67
    %s82 = sphi 0, %s68
    %s86 = sphi 0, %s86
    %s88 = sphi 0, %s86
    %s89 = sphi 0, %s88
    %s103 = sphi 0, %s89
    %s109 = sphi 0, %s111
    %s112 = sphi 0, %s109
    %s113 = sphi 0, %s112
    %s129 = sphi 0, %s113
  $region4: #{tpu_custom_call.1} parent=0 // loop_header_branch
    %13 = sbr.rel (%p11) target = $region8
  $region5: #{tpu_custom_call.1} parent=0 // loop_body
    %s15 = ssub.s32 %s10, 1
    %s16 = ssub.s32 %s10, 2
    %s17 = sadd.s32 %s10, 1
    %s18 = ssub.s32 %s10, %s17
    %p19 = scmp.eq.s32.totalorder %s18, 0
    %s21 = sadd.s32 %s20, 1
    %s22 = scalar_select %p19, %s20, %s21
    %p25 = pneg %p19
    %p26 = scmp.eq.s32.totalorder %s10, 1
    %p27 = por %p25, %p26
    %p28 = scmp.ne.s32.totalorder %s20, %s23
    %p29 = scmp.eq.s32.totalorder %s10, 0
    %p30 = por %p28, %p29
    %p31 = scmp.ne.s32.totalorder %s20, %s23
    %p32 = scmp.eq.s32.totalorder %s15, 1
    %p33 = por %p31, %p32
    %p34 = scmp.ne.s32.totalorder %s23, %s24
    %p35 = scmp.eq.s32.totalorder %s15, 0
    %p36 = por %p34, %p35
    %p37 = scmp.ne.s32.totalorder %s23, %s24
    %p38 = scmp.eq.s32.totalorder %s16, 1
    %p39 = por %p37, %p38
    %p41 = scmp.ne.s32.totalorder %s24, %s40
    %p42 = scmp.eq.s32.totalorder %s16, 0
    %p43 = por %p41, %p42
    %s45 = sadd.s32 %s44, 1
    %p48 = scmp.eq.s32.totalorder %s10, 1
    %p49 = scmp.ne.s32.totalorder %s44, %s46
    %p50 = scmp.eq.s32.totalorder %s10, 0
    %p51 = por %p49, %p50
    %p52 = scmp.ne.s32.totalorder %s44, %s46
    %p53 = scmp.eq.s32.totalorder %s15, 1
    %p54 = por %p52, %p53
    %p55 = scmp.ne.s32.totalorder %s46, %s47
    %p56 = scmp.eq.s32.totalorder %s15, 0
    %p57 = por %p55, %p56
    %p58 = scmp.ne.s32.totalorder %s46, %s47
    %p59 = scmp.eq.s32.totalorder %s16, 1
    %p60 = por %p58, %p59
    %p62 = scmp.ne.s32.totalorder %s47, %s61
    %p63 = scmp.eq.s32.totalorder %s16, 0
    %p64 = por %p62, %p63
    %s66 = sadd.s32 %s65, 1
    %p69 = scmp.eq.s32.totalorder %s10, 1
    %p70 = scmp.ne.s32.totalorder %s65, %s67
    %p71 = scmp.eq.s32.totalorder %s10, 0
    %p72 = por %p70, %p71
    %p73 = scmp.ne.s32.totalorder %s65, %s67
    %p74 = scmp.eq.s32.totalorder %s15, 1
    %p75 = por %p73, %p74
    %p76 = scmp.ne.s32.totalorder %s67, %s68
    %p77 = scmp.eq.s32.totalorder %s15, 0
    %p78 = por %p76, %p77
    %p79 = scmp.ne.s32.totalorder %s67, %s68
    %p80 = scmp.eq.s32.totalorder %s16, 1
    %p81 = por %p79, %p80
    %p83 = scmp.ne.s32.totalorder %s68, %s82
    %p84 = scmp.eq.s32.totalorder %s16, 0
    %p85 = por %p83, %p84
    %s87 = sadd.s32 %s86, 1
    %p90 = scmp.eq.s32.totalorder %s10, 1
    %p91 = scmp.ne.s32.totalorder %s86, %s88
    %p92 = scmp.eq.s32.totalorder %s10, 0
    %p93 = por %p91, %p92
    %p94 = scmp.ne.s32.totalorder %s86, %s88
    %p95 = scmp.eq.s32.totalorder %s15, 1
    %p96 = por %p94, %p95
    %p97 = scmp.ne.s32.totalorder %s88, %s89
    %p98 = scmp.eq.s32.totalorder %s15, 0
    %p99 = por %p97, %p98
    %p100 = scmp.ne.s32.totalorder %s88, %s89
    %p101 = scmp.eq.s32.totalorder %s16, 1
    %p102 = por %p100, %p101
    %p104 = scmp.ne.s32.totalorder %s89, %s103
    %p105 = scmp.eq.s32.totalorder %s16, 0
    %p106 = por %p104, %p105
    %s107 = ssub.s32 %s10, %s17
    %p108 = scmp.eq.s32.totalorder %s107, 0
    %s110 = sadd.s32 %s109, 1
    %s111 = scalar_select %p108, %s109, %s110
    %p114 = pneg %p108
    %p115 = scmp.eq.s32.totalorder %s10, 1
    %p116 = por %p114, %p115
    %p117 = scmp.ne.s32.totalorder %s109, %s112
    %p118 = scmp.eq.s32.totalorder %s10, 0
    %p119 = por %p117, %p118
    %p120 = scmp.ne.s32.totalorder %s109, %s112
    %p121 = scmp.eq.s32.totalorder %s15, 1
    %p122 = por %p120, %p121
    %p123 = scmp.ne.s32.totalorder %s112, %s113
    %p124 = scmp.eq.s32.totalorder %s15, 0
    %p125 = por %p123, %p124
    %p126 = scmp.ne.s32.totalorder %s112, %s113
    %p127 = scmp.eq.s32.totalorder %s16, 1
    %p128 = por %p126, %p127
    %p130 = scmp.ne.s32.totalorder %s113, %s129
    %p131 = scmp.eq.s32.totalorder %s16, 0
    %p132 = por %p130, %p131
    %p133 = scmp.le.s32.totalorder 1, %s10
    %p134 = scmp.lt.s32.totalorder %s10, 3
    %p135 = pnand %p133, %p134
    %p136 = pneg %p135
    // Predicated region
    $region9: #{tpu_custom_call.1} parent=5 // pred_check
      _
    $region10: #{tpu_custom_call.1} parent=5 // pred_check_branch
      %138 = sbr.rel (%p135) target = $region12
    $region11: #{tpu_custom_call.1} parent=5 // pred_region
      %s139 = ssub.s32 %s10, 1
      // Predicated region
      $region13: #{tpu_custom_call.1} parent=11 // pred_check
        %p140 = pneg %p57
      $region14: #{tpu_custom_call.1} parent=11 // pred_check_branch
        %142 = sbr.rel (%p140) target = $region16
      $region15: #{tpu_custom_call.1} parent=11 // pred_region
        _
      $region16: #{tpu_custom_call.1} parent=11 // pred_fallthru
        _
      // Predicated region
      $region17: #{tpu_custom_call.1} parent=11 // pred_check
        %p143 = pneg %p78
      $region18: #{tpu_custom_call.1} parent=11 // pred_check_branch
        %145 = sbr.rel (%p143) target = $region20
      $region19: #{tpu_custom_call.1} parent=11 // pred_region
        _
      $region20: #{tpu_custom_call.1} parent=11 // pred_fallthru
        _
      // Predicated region
      $region21: #{tpu_custom_call.1} parent=11 // pred_check
        %p146 = pneg %p99
      $region22: #{tpu_custom_call.1} parent=11 // pred_check_branch
        %148 = sbr.rel (%p146) target = $region24
      $region23: #{tpu_custom_call.1} parent=11 // pred_region
        _
      $region24: #{tpu_custom_call.1} parent=11 // pred_fallthru
        _
    $region12: #{tpu_custom_call.1} parent=5 // pred_fallthru
      _
    %p149 = scmp.lt.s32.totalorder %s10, 2
    // Predicated region
    $region25: #{tpu_custom_call.1} parent=5 // pred_check
      %p150 = pneg %p149
    $region26: #{tpu_custom_call.1} parent=5 // pred_check_branch
      %152 = sbr.rel (%p150) target = $region28
    $region27: #{tpu_custom_call.1} parent=5 // pred_region
      // Predicated region
      $region29: #{tpu_custom_call.1} parent=27 // pred_check
        %p153 = pneg %p30
      $region30: #{tpu_custom_call.1} parent=27 // pred_check_branch
        %155 = sbr.rel (%p153) target = $region32
      $region31: #{tpu_custom_call.1} parent=27 // pred_region
        %s156 = smul.u32 8, %s10
        %p157 = scmp.lt.s32.totalorder %s156, 15
        %s158 = scalar_select %p157, %s156, 15
        %s159 = smul.addr %s158, 4
        %s160 = scalar_lea.vmem %s0, %s159
        %s161 = smul.u32 8, %s10
      $region32: #{tpu_custom_call.1} parent=27 // pred_fallthru
        _
    $region28: #{tpu_custom_call.1} parent=5 // pred_fallthru
      _
    %p162 = scmp.le.s32.totalorder 1, %s10
    %p163 = scmp.lt.s32.totalorder %s10, 3
    %p164 = pnand %p162, %p163
    %p165 = pneg %p164
    // Predicated region
    $region33: #{tpu_custom_call.1} parent=5 // pred_check
      _
    $region34: #{tpu_custom_call.1} parent=5 // pred_check_branch
      %167 = sbr.rel (%p164) target = $region36
    $region35: #{tpu_custom_call.1} parent=5 // pred_region
      %s168 = ssub.s32 %s10, 1
      %s169 = smul.u32 8, %s15
      %p170 = scmp.lt.s32.totalorder %s169, 15
      %s171 = scalar_select %p170, %s169, 15
      %s172 = smul.addr %s171, 4
      %s173 = scalar_lea.vmem %s0, %s172
      %p174 = pneg %p36
      %p175 = pneg %p33
      %p176 = pneg %p57
      %p177 = pneg %p54
      %p178 = pneg %p78
      %p179 = pneg %p75
      %p180 = pneg %p99
      %p181 = pneg %p96
      %p182 = pneg %p125
      %p183 = pneg %p122
      %s184 = smul.u32 8, %s15
      %p185 = scmp.lt.s32.totalorder %s184, 15
      %s186 = scalar_select %p185, %s184, 15
      %s187 = smul.addr %s186, 4
      %s188 = scalar_lea.vmem %s4, %s187
      %s189 = smul.u32 8, %s15
      %p190 = scmp.lt.s32.totalorder %s189, 15
      %s191 = scalar_select %p190, %s189, 15
      %s192 = smul.addr %s191, 4
      %s193 = scalar_lea.vmem %s0, %s192
      %s194 = smul.u32 8, %s15
      %s195 = smul.u32 8, %s15
      %p196 = scmp.lt.s32.totalorder %s195, 15
      %s197 = scalar_select %p196, %s195, 15
      %s198 = smul.addr %s197, 4
      %s199 = scalar_lea.vmem %s4, %s198
      %s200 = smul.u32 8, %s15
      %v202 = vld [vmem:[%s193] sm:$0xf]
      %v203 = vld [vmem:[%s193 + $0x4] sm:$0xf]
      %v204 = vld [vmem:[%s193 + $0x8] sm:$0xf]
      %v205 = vld [vmem:[%s193 + $0xc] sm:$0xf]
      %v206 = vld [vmem:[%s193 + $0x10] sm:$0xf]
      %v207 = vld [vmem:[%s193 + $0x14] sm:$0xf]
      %v208 = vld [vmem:[%s193 + $0x18] sm:$0xf]
      %v209 = vld [vmem:[%s193 + $0x1c] sm:$0xf]
      %v210 = vld [vmem:[%s1] sm:$0xf]
      %v211 = vld [vmem:[%s1 + $0x4] sm:$0xf]
      %v212 = vld [vmem:[%s1 + $0x8] sm:$0xf]
      %v213 = vld [vmem:[%s1 + $0xc] sm:$0x3]
      %v222 = vunpack.c.l.b16 %v202
      %v223 = vunpack.c.l.b16 %v203
      %v224 = vunpack.c.l.b16 %v204
      %v225 = vunpack.c.l.b16 %v205
      %v226 = vunpack.c.l.b16 %v206
      %v227 = vunpack.c.l.b16 %v207
      %v228 = vunpack.c.l.b16 %v208
      %v229 = vunpack.c.l.b16 %v209
      %v230 = vpack.c.b16 %v223, %v222
      %v231 = vpack.c.b16 %v225, %v224
      %v232 = vpack.c.b16 %v227, %v226
      %v233 = vpack.c.b16 %v229, %v228
      %v238 = vunpack.c.l.b16 %v210
      %v239 = vunpack.c.l.b16 %v211
      %v240 = vunpack.c.l.b16 %v212
      %v241 = vunpack.c.l.b16 %v213
      %v242 = vpack.c.b16 %v239, %v238
      %v243 = vpack.c.b16 %v241, %v240
      %vm245 = vcmask 220160
      %v247 = vsel %vm245, %v230, 0
      %v250 = vsel %vm245, %v231, 0
      %v253 = vsel %vm245, %v232, 0
      %v256 = vsel %vm245, %v233, 0
      %vm258 = vcmask 1044480
      %vm259 = vcmask 1045504
      %v260 = vsel %vm258, 4294967295, 65535
      %v261 = vsel %vm259, %v260, 0
      %v263 = vand.u32 %v243, %v261
      %265 = vmatprep.subr.bf16.mxu0 0
      %266 = vmatpush1.bf16.msra.mxu0 0
      %267 = vmatprep.subr.bf16.mxu0 0
      %268 = vmatpush1.bf16.msra.mxu0 0
      %269 = vmatprep.subr.bf16.mxu0 0
      %270 = vmatpush1.bf16.msra.mxu0 0
      %271 = vmatprep.subr.bf16.mxu0 0
      %272 = vmatpush1.bf16.msra.mxu0 0
      %273 = vmatprep.subr.bf16.mxu0 0
      %274 = vmatpush1.bf16.msra.mxu0 0
      %275 = vmatprep.subr.bf16.mxu0 0
      %276 = vmatpush1.bf16.msra.mxu0 0
      %277 = vmatprep.subr.bf16.mxu0 0
      %278 = vmatpush1.bf16.msra.mxu0 %v263
      %279 = vmatprep.subr.bf16.mxu0 0
      %280 = vmatpush1.bf16.msra.mxu0 %v242
      %281 = vmatprep.subr.bf16.mxu0 0
      %282 = vmatpush2.bf16.msra.mxu0 0
      %283 = vmatprep.subr.bf16.mxu0 0
      %284 = vmatpush2.bf16.msra.mxu0 0
      %285 = vmatprep.subr.bf16.mxu0 0
      %286 = vmatpush2.bf16.msra.mxu0 0
      %287 = vmatprep.subr.bf16.mxu0 0
      %288 = vmatpush2.bf16.msra.mxu0 0
      %289 = vmatprep.subr.bf16.mxu0 0
      %290 = vmatpush2.bf16.msra.mxu0 0
      %291 = vmatprep.subr.bf16.mxu0 0
      %292 = vmatpush2.bf16.msra.mxu0 0
      %293 = vmatprep.subr.bf16.mxu0 0
      %294 = vmatpush2.bf16.msra.mxu0 0
      %295 = vmatprep.subr.bf16.mxu0 0
      %296 = vmatpush2.bf16.msra.mxu0 0
      %297 = vmatprep.mubr.bf16.mxu0 0
      %298 = vmatmul.mubr.bf16.gmra.mxu0 %v247
      %v299 = vpop.f32.mrf.mxu0
      %v300 = vadd.f32 0.0, %v299
      %v301 = vpop.f32.mrf.mxu0
      %v302 = vpop.f32.mrf.mxu0
      %v303 = vadd.f32 0.0, %v302
      %v304 = vpop.f32.mrf.mxu0
      %305 = vmatprep.mubr.bf16.mxu0 0
      %306 = vmatmul.mubr.bf16.gmra.mxu0 %v250
      %v307 = vpop.f32.mrf.mxu0
      %v308 = vadd.f32 0.0, %v307
      %v309 = vpop.f32.mrf.mxu0
      %v310 = vpop.f32.mrf.mxu0
      %v311 = vadd.f32 0.0, %v310
      %v312 = vpop.f32.mrf.mxu0
      %313 = vmatprep.mubr.bf16.mxu0 0
      %314 = vmatmul.mubr.bf16.gmra.mxu0 %v253
      %v315 = vpop.f32.mrf.mxu0
      %v316 = vadd.f32 0.0, %v315
      %v317 = vpop.f32.mrf.mxu0
      %v318 = vpop.f32.mrf.mxu0
      %v319 = vadd.f32 0.0, %v318
      %v320 = vpop.f32.mrf.mxu0
      %321 = vmatprep.mubr.bf16.mxu0 0
      %322 = vmatmul.mubr.bf16.gmra.mxu0 %v256
      %v323 = vpop.f32.mrf.mxu0
      %v324 = vadd.f32 0.0, %v323
      %v325 = vpop.f32.mrf.mxu0
      %v326 = vpop.f32.mrf.mxu0
      %v327 = vadd.f32 0.0, %v326
      %v328 = vpop.f32.mrf.mxu0
      %329 = vdwg.mxu0
      %v330 = vld [vmem:[%s2] sm:$0x1]
      %v332 = vlaneseq
      %v333 = vshrl.u32 %v332, 7
      %v334 = vsub.s32 0, %v333
      %v335 = vrot.slane %v330, %v334
      %v337 = vmul.f32 %v300, %v335
      %v338 = vmul.f32 %v303, %v335
      %v339 = vmul.f32 %v308, %v335
      %v340 = vmul.f32 %v311, %v335
      %v341 = vmul.f32 %v316, %v335
      %v342 = vmul.f32 %v319, %v335
      %v343 = vmul.f32 %v324, %v335
      %v344 = vmul.f32 %v327, %v335
      %v345 = vld [vmem:[%s3] sm:$0x1]
      %v347 = vlaneseq
      %v348 = vshrl.u32 %v347, 7
      %v349 = vsub.s32 0, %v348
      %v350 = vrot.slane %v345, %v349
      %v352 = vadd.f32 %v337, %v350
      %v353 = vadd.f32 %v338, %v350
      %v354 = vadd.f32 %v339, %v350
      %v355 = vadd.f32 %v340, %v350
      %v356 = vadd.f32 %v341, %v350
      %v357 = vadd.f32 %v342, %v350
      %v358 = vadd.f32 %v343, %v350
      %v359 = vadd.f32 %v344, %v350
      %vm360 = vcmp.ge.f32.partialorder %v352, 0.0
      %vm361 = vcmp.ge.f32.partialorder %v353, 0.0
      %vm362 = vcmp.ge.f32.partialorder %v354, 0.0
      %vm363 = vcmp.ge.f32.partialorder %v355, 0.0
      %vm364 = vcmp.ge.f32.partialorder %v356, 0.0
      %vm365 = vcmp.ge.f32.partialorder %v357, 0.0
      %vm366 = vcmp.ge.f32.partialorder %v358, 0.0
      %vm367 = vcmp.ge.f32.partialorder %v359, 0.0
      %v368 = vsel %vm360, 1.0, -1.0
      %v369 = vsel %vm361, 1.0, -1.0
      %v370 = vsel %vm362, 1.0, -1.0
      %v371 = vsel %vm363, 1.0, -1.0
      %v372 = vsel %vm364, 1.0, -1.0
      %v373 = vsel %vm365, 1.0, -1.0
      %v374 = vsel %vm366, 1.0, -1.0
      %v375 = vsel %vm367, 1.0, -1.0
      %v376 = vpack.c.bf16 %v369, %v368
      %v377 = vpack.c.bf16 %v371, %v370
      %v378 = vpack.c.bf16 %v373, %v372
      %v379 = vpack.c.bf16 %v375, %v374
      %v384 = vunpack.c.l.b16 %v376
      %v385 = vunpack.c.h.b16 %v376
      %v386 = vunpack.c.l.b16 %v377
      %v387 = vunpack.c.h.b16 %v377
      %v388 = vunpack.c.l.b16 %v378
      %v389 = vunpack.c.h.b16 %v378
      %v390 = vunpack.c.l.b16 %v379
      %v391 = vunpack.c.h.b16 %v379
      %v392 = vpack.c.b16 %v384, %v384
      %v393 = vpack.c.b16 %v385, %v385
      %v394 = vpack.c.b16 %v386, %v386
      %v395 = vpack.c.b16 %v387, %v387
      %v396 = vpack.c.b16 %v388, %v388
      %v397 = vpack.c.b16 %v389, %v389
      %v398 = vpack.c.b16 %v390, %v390
      %v399 = vpack.c.b16 %v391, %v391
      %vm408 = vcmask 519168
      %409 = vst.msk [vmem:[%s199] sm:$0xf] %vm408, %v392
      %410 = vst.msk [vmem:[%s199 + $0x4] sm:$0xf] %vm408, %v393
      %411 = vst.msk [vmem:[%s199 + $0x8] sm:$0xf] %vm408, %v394
      %412 = vst.msk [vmem:[%s199 + $0xc] sm:$0xf] %vm408, %v395
      %413 = vst.msk [vmem:[%s199 + $0x10] sm:$0xf] %vm408, %v396
      %414 = vst.msk [vmem:[%s199 + $0x14] sm:$0xf] %vm408, %v397
      %415 = vst.msk [vmem:[%s199 + $0x18] sm:$0xf] %vm408, %v398
      %416 = vst.msk [vmem:[%s199 + $0x1c] sm:$0xf] %vm408, %v399
      %s417 = smul.u32 8, %s15
      %p418 = scmp.lt.s32.totalorder %s417, 15
      %s419 = scalar_select %p418, %s417, 15
      %s420 = smul.addr %s419, 4
      %s421 = scalar_lea.vmem %s4, %s420
      // Predicated region
      $region37: #{tpu_custom_call.1} parent=35 // pred_check
        %p422 = pneg %p122
      $region38: #{tpu_custom_call.1} parent=35 // pred_check_branch
        %424 = sbr.rel (%p422) target = $region40
      $region39: #{tpu_custom_call.1} parent=35 // pred_region
        %s425 = smul.u32 8, %s15
      $region40: #{tpu_custom_call.1} parent=35 // pred_fallthru
        _
    $region36: #{tpu_custom_call.1} parent=5 // pred_fallthru
      _
    %p426 = scmp.le.s32.totalorder 2, %s10
    // Predicated region
    $region41: #{tpu_custom_call.1} parent=5 // pred_check
      %p427 = pneg %p426
    $region42: #{tpu_custom_call.1} parent=5 // pred_check_branch
      %429 = sbr.rel (%p427) target = $region44
    $region43: #{tpu_custom_call.1} parent=5 // pred_region
      %s430 = ssub.s32 %s10, 2
      // Predicated region
      $region45: #{tpu_custom_call.1} parent=43 // pred_check
        %p431 = pneg %p128
      $region46: #{tpu_custom_call.1} parent=43 // pred_check_branch
        %433 = sbr.rel (%p431) target = $region48
      $region47: #{tpu_custom_call.1} parent=43 // pred_region
        %s434 = smul.u32 8, %s16
        %p435 = scmp.lt.s32.totalorder %s434, 15
        %s436 = scalar_select %p435, %s434, 15
        %s437 = smul.addr %s436, 4
        %s438 = scalar_lea.vmem %s4, %s437
      $region48: #{tpu_custom_call.1} parent=43 // pred_fallthru
        _
    $region44: #{tpu_custom_call.1} parent=5 // pred_fallthru
      _
  $region6: #{tpu_custom_call.1} parent=0 // loop_footer
    %s14 = sadd.s32 1, %s10
  $region7: #{tpu_custom_call.1} parent=0 // loop_footer_branch
    %9 = sbr.rel target = $region3
  $region8: #{tpu_custom_call.1} parent=0 // loop_exit
    _

</llo_original>
